<compile_context>
chip_gen: v7x
topology: tpu7x:2x2x1
jax: 0.10.0
libtpu: 0.0.40
codegen_flags: <defaults>
</compile_context>

<pallas_src>
import functools

import jax
import jax.numpy as jnp
import numpy as np
from jax.experimental import pallas as pl
from jax.experimental.pallas import tpu as pltpu


def _round_up(a, b):
    return (a + b - 1) // b * b


# ----------------------------------------------------------------------------
# Kernel
# ----------------------------------------------------------------------------
def xlstm_cell_kernel(H, Hp, x_ref, state_ref, wx_ref, whm_ref, wpm_ref,
                      vec_ref, out_ref):
    GP = 5 * Hp
    wdt = wx_ref.dtype

    # Packed small vectors: [b_gates | b_pm | g_c | b_c | g_m | b_m | g_h | b_h]
    b_gates = vec_ref[:, 0:GP]
    off = GP
    b_pm = vec_ref[:, off:off + Hp]; off += Hp
    g_c = vec_ref[:, off:off + Hp]; off += Hp
    b_c = vec_ref[:, off:off + Hp]; off += Hp
    g_m = vec_ref[:, off:off + Hp]; off += Hp
    b_m = vec_ref[:, off:off + Hp]; off += Hp
    g_h = vec_ref[:, off:off + Hp]; off += Hp
    b_h = vec_ref[:, off:off + Hp]

    # Lane mask for the real features: padding lanes must not contaminate the
    # two-pass LayerNorm statistics (and stay exactly zero on output).
    lane = jax.lax.broadcasted_iota(jnp.int32, (1, Hp), 1)
    mask = (lane < H).astype(jnp.float32)
    inv_n = 1.0 / H

    def layernorm(v, gamma, beta, eps=1e-5):
        # Two-pass (masked) statistics: avoids E[x^2]-E[x]^2 cancellation,
        # divides by the true feature count H (PyTorch biased variance).
        mu = jnp.sum(v, axis=-1, keepdims=True) * inv_n
        centered = (v - mu) * mask                    # zero in padding lanes
        var = jnp.sum(centered * centered, axis=-1, keepdims=True) * inv_n
        return centered * jax.lax.rsqrt(var + eps) * gamma + beta

    # Fused gate pre-activation; casts to the weight dtype happen in-kernel.
    pre = jnp.dot(x_ref[...].astype(wdt), wx_ref[...],
                  preferred_element_type=jnp.float32)
    pre += jnp.dot(state_ref[:, 0:2 * Hp].astype(wdt), whm_ref[...],
                   preferred_element_type=jnp.float32)
    pre += b_gates

    m_prev = state_ref[:, Hp:2 * Hp]        # zero in padding lanes
    c_prev = state_ref[:, 2 * Hp:3 * Hp]    # zero in padding lanes

    # Gate epilogue ordered to keep the number of live (bb, Hp) f32 tiles low
    # (vreg pressure): i/f/c_tilde are consumed into c before e and o exist.
    i_g = jax.nn.sigmoid(pre[:, 0 * Hp:1 * Hp])
    f_g = jax.nn.sigmoid(pre[:, 1 * Hp:2 * Hp])
    c_t = jnp.tanh(pre[:, 4 * Hp:5 * Hp])
    c = layernorm(f_g * c_prev + i_g * c_t, g_c, b_c)

    pm = jnp.dot(c.astype(wdt), wpm_ref[...],
                 preferred_element_type=jnp.float32) + b_pm
    e_g = jax.nn.sigmoid(pre[:, 3 * Hp:4 * Hp])
    m = layernorm((1.0 - e_g) * m_prev + e_g * pm, g_m, b_m)

    o_g = jax.nn.sigmoid(pre[:, 2 * Hp:3 * Hp])
    h = layernorm(o_g * jnp.tanh(c + m), g_h, b_h)

    # Lane-dense output slab [h | m | c]: identical layout to the input state
    # slab, so the next step consumes it directly (no wrapper repacking).
    out_ref[:, 0 * Hp:1 * Hp] = h.astype(out_ref.dtype)
    out_ref[:, 1 * Hp:2 * Hp] = m.astype(out_ref.dtype)
    out_ref[:, 2 * Hp:3 * Hp] = c.astype(out_ref.dtype)


# ----------------------------------------------------------------------------
# Parameter init (deterministic, mirroring nn.Linear / nn.LayerNorm shapes)
# ----------------------------------------------------------------------------
_X_GATES = ["W_ix", "W_fx", "W_ox", "W_ex", "W_cx"]
_H_GATES = ["W_ih", "W_fh", "W_oh", "W_eh", "W_ch"]
_M_GATES = ["W_im", "W_fm", "W_om", "W_em"]
_GATE_TRIPLES = [("W_ix", "W_ih", "W_im"),
                 ("W_fx", "W_fh", "W_fm"),
                 ("W_ox", "W_oh", "W_om"),
                 ("W_ex", "W_eh", "W_em"),
                 ("W_cx", "W_ch", None)]


def init_params(key, input_size, hidden_size):
    params = {}
    linear_names = _X_GATES + _H_GATES + _M_GATES + ["W_pm"]
    keys = jax.random.split(key, 2 * len(linear_names))
    for idx, name in enumerate(linear_names):
        fan_in = input_size if name in _X_GATES else hidden_size
        bound = 1.0 / np.sqrt(fan_in)
        w = jax.random.uniform(keys[2 * idx], (hidden_size, fan_in),
                               minval=-bound, maxval=bound, dtype=jnp.float32)
        b = jax.random.uniform(keys[2 * idx + 1], (hidden_size,),
                               minval=-bound, maxval=bound, dtype=jnp.float32)
        params[name] = {"w": w, "b": b}  # torch layout: (out, in), (out,)
    for ln in ["ln_cell", "ln_hidden", "ln_memory"]:
        params[ln] = {"gamma": jnp.ones((hidden_size,), jnp.float32),
                      "beta": jnp.zeros((hidden_size,), jnp.float32)}
    return params


# ----------------------------------------------------------------------------
# One-time packing (call ONCE, outside the per-step path)
# ----------------------------------------------------------------------------
def pack_params(params, input_size, hidden_size, dtype=jnp.float32):
    """Pack weights into lane-aligned, kernel-ready layout.

    dtype: MXU weight dtype (use jnp.bfloat16 on v6e/v7x for throughput /
    VMEM at large H; accumulation stays f32 in-kernel).
    """
    H, I = hidden_size, input_size
    Hp = _round_up(H, 128)
    GP = 5 * Hp

    # wx: x-rows only.  whm: rows [0, Hp) are h-rows, rows [Hp, 2*Hp) are
    # m-rows — this matches the state slab layout [h | m | c] exactly, so the
    # kernel can feed slab[:, :2*Hp] straight into the MXU.  Padding
    # rows/lanes are zero everywhere, so padding lanes stay mathematically
    # inert through the whole step.
    wx = jnp.zeros((I, GP), jnp.float32)
    whm = jnp.zeros((2 * Hp, GP), jnp.float32)
    bg = jnp.zeros((GP,), jnp.float32)
    for g, (nx, nh, nm) in enumerate(_GATE_TRIPLES):
        col = g * Hp
        wx = wx.at[:, col:col + H].set(params[nx]["w"].T)
        whm = whm.at[0:H, col:col + H].set(params[nh]["w"].T)
        b = params[nx]["b"] + params[nh]["b"]
        if nm is not None:
            whm = whm.at[Hp:Hp + H, col:col + H].set(params[nm]["w"].T)
            b = b + params[nm]["b"]
        bg = bg.at[col:col + H].set(b)

    wpm = jnp.zeros((Hp, Hp), jnp.float32).at[:H, :H].set(params["W_pm"]["w"].T)

    def pad_h(v):
        return jnp.zeros((Hp,), jnp.float32).at[:H].set(v)

    vec = jnp.concatenate([
        bg,
        pad_h(params["W_pm"]["b"]),
        pad_h(params["ln_cell"]["gamma"]), pad_h(params["ln_cell"]["beta"]),
        pad_h(params["ln_memory"]["gamma"]), pad_h(params["ln_memory"]["beta"]),
        pad_h(params["ln_hidden"]["gamma"]), pad_h(params["ln_hidden"]["beta"]),
    ]).reshape(1, GP + 7 * Hp)

    return {
        "wx": wx.astype(dtype),
        "whm": whm.astype(dtype),
        "wpm": wpm.astype(dtype),
        "vec": vec,                      # biases / LN params stay f32
        "input_size": I,
        "hidden_size": H,
        "padded_hidden": Hp,
    }


# ----------------------------------------------------------------------------
# Packed-state helpers (only needed at sequence boundaries)
# ----------------------------------------------------------------------------
def pack_state(h, c, m, hidden_size, padded_hidden):
    H, Hp = hidden_size, padded_hidden
    B = h.shape[0]
    slab = jnp.zeros((B, 3 * Hp), jnp.float32)
    slab = slab.at[:, 0:H].set(h)
    slab = slab.at[:, Hp:Hp + H].set(m)
    slab = slab.at[:, 2 * Hp:2 * Hp + H].set(c)
    return slab


def unpack_state(slab, hidden_size, padded_hidden):
    H, Hp = hidden_size, padded_hidden
    return slab[:, 0:H], slab[:, 2 * Hp:2 * Hp + H], slab[:, Hp:Hp + H]  # h, c, m


def _pick_block_batch(B):
    # Largest batch tile <= 256 that exactly divides B and is sublane-aligned.
    bb = B
    for cand in range(min(B, 256), 7, -1):
        if B % cand == 0 and cand % 8 == 0:
            bb = cand
            break
    # If the whole batch fits in one block, split it in two (when alignment
    # allows) so both TensorCores run on megacore parts (v7x).
    if bb == B and B >= 16 and B % 16 == 0:
        bb = B // 2
    return bb


# ----------------------------------------------------------------------------
# Per-step fast path: packed state slab in -> packed state slab out
# ----------------------------------------------------------------------------
def xlstm_cell_step(packed, x, state):
    I = packed["input_size"]
    H = packed["hidden_size"]
    Hp = packed["padded_hidden"]
    GP = 5 * Hp
    Lv = GP + 7 * Hp
    B = x.shape[0]

    bb = _pick_block_batch(B)
    grid = (B // bb,)

    wx, whm, wpm, vec = packed["wx"], packed["whm"], packed["wpm"], packed["vec"]
    w_itemsize = jnp.dtype(wx.dtype).itemsize
    w_bytes = (wx.size + whm.size + wpm.size) * w_itemsize + vec.size * 4
    io_bytes = x.size * x.dtype.itemsize + 2 * B * 3 * Hp * 4
    blk_bytes = bb * (I * 4 + 2 * 3 * Hp * 4 + 5 * Hp * 4)
    vmem_limit = int(min(64 << 20, max(2 * (w_bytes + blk_bytes) + (8 << 20),
                                       32 << 20)))

    flops = 2 * B * GP * (I + 2 * Hp) + 2 * B * Hp * Hp + 14 * B * Hp
    transc = 6 * B * Hp + 3 * B

    return pl.pallas_call(
        functools.partial(xlstm_cell_kernel, H, Hp),
        out_shape=jax.ShapeDtypeStruct((B, 3 * Hp), jnp.float32),
        grid=grid,
        in_specs=[
            pl.BlockSpec((bb, I), lambda b: (b, 0)),         # x
            pl.BlockSpec((bb, 3 * Hp), lambda b: (b, 0)),    # state slab [h|m|c]
            pl.BlockSpec((I, GP), lambda b: (0, 0)),         # wx
            pl.BlockSpec((2 * Hp, GP), lambda b: (0, 0)),    # whm
            pl.BlockSpec((Hp, Hp), lambda b: (0, 0)),        # wpm
            pl.BlockSpec((1, Lv), lambda b: (0, 0)),         # packed vectors
        ],
        out_specs=pl.BlockSpec((bb, 3 * Hp), lambda b: (b, 0)),
        input_output_aliases={1: 0},                          # state slab reuse
        compiler_params=pltpu.CompilerParams(
            dimension_semantics=("parallel",),
            vmem_limit_bytes=vmem_limit),
        cost_estimate=pl.CostEstimate(
            flops=int(flops), transcendentals=int(transc),
            bytes_accessed=int(w_bytes + io_bytes)),
    )(x, state, wx, whm, wpm, vec)


# ----------------------------------------------------------------------------
# Module-interface convenience wrapper: (x, (h, c, m)) -> (h, (h, c, m))
# (For sequences, keep the packed slab between steps and call
#  xlstm_cell_step directly instead.)
# ----------------------------------------------------------------------------
def xlstm_cell(packed, x, hidden):
    h_prev, c_prev, m_prev = hidden
    H, Hp = packed["hidden_size"], packed["padded_hidden"]
    state = pack_state(h_prev, c_prev, m_prev, H, Hp)
    new_state = xlstm_cell_step(packed, x, state)
    h, c, m = unpack_state(new_state, H, Hp)
    return h, (h, c, m)


# ----------------------------------------------------------------------------
# Pure-JAX reference (mirrors the PyTorch forward exactly)
# ----------------------------------------------------------------------------
def _lin(p, v):
    return v @ p["w"].T + p["b"]


def _ln_ref(p, v, eps=1e-5):
    mu = jnp.mean(v, axis=-1, keepdims=True)
    var = jnp.mean((v - mu) ** 2, axis=-1, keepdims=True)
    return (v - mu) / jnp.sqrt(var + eps) * p["gamma"] + p["beta"]


def xlstm_cell_ref(params, x, hidden):
    h_prev, c_prev, m_prev = hidden
    sig = jax.nn.sigmoid
    i = sig(_lin(params["W_ix"], x) + _lin(params["W_ih"], h_prev) + _lin(params["W_im"], m_prev))
    f = sig(_lin(params["W_fx"], x) + _lin(params["W_fh"], h_prev) + _lin(params["W_fm"], m_prev))
    o = sig(_lin(params["W_ox"], x) + _lin(params["W_oh"], h_prev) + _lin(params["W_om"], m_prev))
    e = sig(_lin(params["W_ex"], x) + _lin(params["W_eh"], h_prev) + _lin(params["W_em"], m_prev))
    c_tilde = jnp.tanh(_lin(params["W_cx"], x) + _lin(params["W_ch"], h_prev))
    c = f * c_prev + i * c_tilde
    c = _ln_ref(params["ln_cell"], c)
    m = (1 - e) * m_prev + e * _lin(params["W_pm"], c)
    m = _ln_ref(params["ln_memory"], m)
    h = o * jnp.tanh(c + m)
    h = _ln_ref(params["ln_hidden"], h)
    return h, (h, c, m)


# ----------------------------------------------------------------------------
if __name__ == "__main__":
    B, INPUT_SIZE, HIDDEN_SIZE = 8, 16, 32

    key = jax.random.PRNGKey(0)
    k_param, kx, kh, kc, km = jax.random.split(key, 5)

    params = init_params(k_param, INPUT_SIZE, HIDDEN_SIZE)
    packed = pack_params(params, INPUT_SIZE, HIDDEN_SIZE)               # f32
    packed_bf16 = pack_params(params, INPUT_SIZE, HIDDEN_SIZE,
                              dtype=jnp.bfloat16)                        # bf16 MXU path

    x = jax.random.normal(kx, (B, INPUT_SIZE), jnp.float32)
    h0 = jax.random.normal(kh, (B, HIDDEN_SIZE), jnp.float32)
    c0 = jax.random.normal(kc, (B, HIDDEN_SIZE), jnp.float32)
    m0 = jax.random.normal(km, (B, HIDDEN_SIZE), jnp.float32)

    # Jitted so the state-slab pack/unpack and the aliased state buffer stay
    # internal to one compiled program (real usage: slab carried across steps).
    run_f32 = jax.jit(lambda xv, hv, cv, mv: xlstm_cell(packed, xv, (hv, cv, mv)))
    run_bf16 = jax.jit(lambda xv, hv, cv, mv: xlstm_cell(packed_bf16, xv, (hv, cv, mv)))

    out, (h1, c1, m1) = run_f32(x, h0, c0, m0)
    jax.block_until_ready((out, h1, c1, m1))

    ref_out, (rh, rc, rm) = xlstm_cell_ref(params, x, (h0, c0, m0))
    np.testing.assert_allclose(np.asarray(out), np.asarray(ref_out), rtol=1e-4, atol=1e-4)
    np.testing.assert_allclose(np.asarray(c1), np.asarray(rc), rtol=1e-4, atol=1e-4)
    np.testing.assert_allclose(np.asarray(m1), np.asarray(rm), rtol=1e-4, atol=1e-4)

    # bf16-weight path (v6e/v7x throughput / VMEM), looser tolerance.
    out_b, (hb, cb, mb) = run_bf16(x, h0, c0, m0)
    jax.block_until_ready((out_b, hb, cb, mb))
    np.testing.assert_allclose(np.asarray(out_b), np.asarray(ref_out), rtol=5e-2, atol=5e-2)
    np.testing.assert_allclose(np.asarray(cb), np.asarray(rc), rtol=5e-2, atol=5e-2)
    np.testing.assert_allclose(np.asarray(mb), np.asarray(rm), rtol=5e-2, atol=5e-2)

    print("KERNEL_OK")
</pallas_src>

<mosaic_0001>
module attributes {stable_mosaic.version = 11 : i64} {
  func.func @xlstm_cell_kernel(%arg0: i32, %arg1: memref<8x16xf32, #tpu.memory_space<vmem>>, %arg2: memref<8x384xf32, #tpu.memory_space<vmem>>, %arg3: memref<16x640xf32, #tpu.memory_space<vmem>>, %arg4: memref<256x640xf32, #tpu.memory_space<vmem>>, %arg5: memref<128x128xf32, #tpu.memory_space<vmem>>, %arg6: memref<1x1536xf32, #tpu.memory_space<vmem>>, %arg7: memref<8x384xf32, #tpu.memory_space<vmem>>) attributes {dimension_semantics = [#tpu.dimension_semantics<parallel>], iteration_bounds = array<i64: 1>, scalar_prefetch = 0 : i64, scratch_operands = 0 : i64, tpu.core_type = #tpu.core_type<tc>, window_params = [{transform_indices = @transform_0, window_bounds = array<i64: 8, 16>}, {transform_indices = @transform_1, window_bounds = array<i64: 8, 384>}, {pipeline_mode = #tpu.pipeline_mode<synchronous>, transform_indices = @transform_2, window_bounds = array<i64: 16, 640>}, {pipeline_mode = #tpu.pipeline_mode<synchronous>, transform_indices = @transform_3, window_bounds = array<i64: 256, 640>}, {pipeline_mode = #tpu.pipeline_mode<synchronous>, transform_indices = @transform_4, window_bounds = array<i64: 128, 128>}, {pipeline_mode = #tpu.pipeline_mode<synchronous>, transform_indices = @transform_5, window_bounds = array<i64: 1, 1536>}, {transform_indices = @transform_6, window_bounds = array<i64: 8, 384>}]} {
    %c0 = arith.constant 0 : index
    %c0_0 = arith.constant 0 : index
    %0 = vector.load %arg6[%c0, %c0_0] : memref<1x1536xf32, #tpu.memory_space<vmem>>, vector<1x640xf32>
    %c0_1 = arith.constant 0 : index
    %c640 = arith.constant 640 : index
    %1 = vector.load %arg6[%c0_1, %c640] : memref<1x1536xf32, #tpu.memory_space<vmem>>, vector<1x128xf32>
    %c0_2 = arith.constant 0 : index
    %c768 = arith.constant 768 : index
    %2 = vector.load %arg6[%c0_2, %c768] : memref<1x1536xf32, #tpu.memory_space<vmem>>, vector<1x128xf32>
    %c0_3 = arith.constant 0 : index
    %c896 = arith.constant 896 : index
    %3 = vector.load %arg6[%c0_3, %c896] : memref<1x1536xf32, #tpu.memory_space<vmem>>, vector<1x128xf32>
    %c0_4 = arith.constant 0 : index
    %c1024 = arith.constant 1024 : index
    %4 = vector.load %arg6[%c0_4, %c1024] : memref<1x1536xf32, #tpu.memory_space<vmem>>, vector<1x128xf32>
    %c0_5 = arith.constant 0 : index
    %c1152 = arith.constant 1152 : index
    %5 = vector.load %arg6[%c0_5, %c1152] : memref<1x1536xf32, #tpu.memory_space<vmem>>, vector<1x128xf32>
    %c0_6 = arith.constant 0 : index
    %c1280 = arith.constant 1280 : index
    %6 = vector.load %arg6[%c0_6, %c1280] : memref<1x1536xf32, #tpu.memory_space<vmem>>, vector<1x128xf32>
    %c0_7 = arith.constant 0 : index
    %c1408 = arith.constant 1408 : index
    %7 = vector.load %arg6[%c0_7, %c1408] : memref<1x1536xf32, #tpu.memory_space<vmem>>, vector<1x128xf32>
    %8 = tpu.iota {dimensions = array<i32: 1>} : vector<1x128xi32>
    %c32_i32 = arith.constant 32 : i32
    %9 = vector.broadcast %c32_i32 : i32 to vector<1x128xi32>
    %10 = arith.cmpi slt, %8, %9 : vector<1x128xi32>
    %11 = arith.extui %10 : vector<1x128xi1> to vector<1x128xi32>
    %12 = arith.sitofp %11 : vector<1x128xi32> to vector<1x128xf32>
    %c0_8 = arith.constant 0 : index
    %c0_9 = arith.constant 0 : index
    %13 = vector.load %arg1[%c0_8, %c0_9] : memref<8x16xf32, #tpu.memory_space<vmem>>, vector<8x16xf32>
    %c0_10 = arith.constant 0 : index
    %c0_11 = arith.constant 0 : index
    %14 = vector.load %arg3[%c0_10, %c0_11] : memref<16x640xf32, #tpu.memory_space<vmem>>, vector<16x640xf32>
    %cst = arith.constant dense<0.000000e+00> : vector<8x640xf32>
    %15 = tpu.matmul %13, %14, %cst {dimension_numbers = #tpu.dot_dimension_numbers<[1], [0], [0], [1], [0, 0, 1, 1], [], []>} : vector<8x16xf32>, vector<16x640xf32>, vector<8x640xf32> -> vector<8x640xf32>
    %c0_12 = arith.constant 0 : index
    %c0_13 = arith.constant 0 : index
    %16 = vector.load %arg2[%c0_12, %c0_13] : memref<8x384xf32, #tpu.memory_space<vmem>>, vector<8x256xf32>
    %c0_14 = arith.constant 0 : index
    %c0_15 = arith.constant 0 : index
    %17 = vector.load %arg4[%c0_14, %c0_15] : memref<256x640xf32, #tpu.memory_space<vmem>>, vector<256x640xf32>
    %cst_16 = arith.constant dense<0.000000e+00> : vector<8x640xf32>
    %18 = tpu.matmul %16, %17, %cst_16 {dimension_numbers = #tpu.dot_dimension_numbers<[1], [0], [0], [1], [0, 0, 1, 1], [], []>} : vector<8x256xf32>, vector<256x640xf32>, vector<8x640xf32> -> vector<8x640xf32>
    %19 = arith.addf %15, %18 : vector<8x640xf32>
    %20 = vector.broadcast %0 : vector<1x640xf32> to vector<8x640xf32>
    %21 = arith.addf %19, %20 : vector<8x640xf32>
    %c0_17 = arith.constant 0 : index
    %c128 = arith.constant 128 : index
    %22 = vector.load %arg2[%c0_17, %c128] : memref<8x384xf32, #tpu.memory_space<vmem>>, vector<8x128xf32>
    %c0_18 = arith.constant 0 : index
    %c256 = arith.constant 256 : index
    %23 = vector.load %arg2[%c0_18, %c256] : memref<8x384xf32, #tpu.memory_space<vmem>>, vector<8x128xf32>
    %24 = vector.extract_strided_slice %21 {offsets = [0, 0], sizes = [8, 128], strides = [1, 1]} : vector<8x640xf32> to vector<8x128xf32>
    %25 = arith.negf %24 : vector<8x128xf32>
    %26 = math.exp %25 : vector<8x128xf32>
    %cst_19 = arith.constant 1.000000e+00 : f32
    %27 = vector.broadcast %cst_19 : f32 to vector<8x128xf32>
    %28 = arith.addf %27, %26 : vector<8x128xf32>
    %29 = arith.divf %27, %28 : vector<8x128xf32>
    %30 = vector.extract_strided_slice %21 {offsets = [0, 128], sizes = [8, 128], strides = [1, 1]} : vector<8x640xf32> to vector<8x128xf32>
    %31 = arith.negf %30 : vector<8x128xf32>
    %32 = math.exp %31 : vector<8x128xf32>
    %cst_20 = arith.constant 1.000000e+00 : f32
    %33 = vector.broadcast %cst_20 : f32 to vector<8x128xf32>
    %34 = arith.addf %33, %32 : vector<8x128xf32>
    %35 = arith.divf %33, %34 : vector<8x128xf32>
    %36 = vector.extract_strided_slice %21 {offsets = [0, 512], sizes = [8, 128], strides = [1, 1]} : vector<8x640xf32> to vector<8x128xf32>
    %37 = math.tanh %36 : vector<8x128xf32>
    %38 = arith.mulf %35, %23 : vector<8x128xf32>
    %39 = arith.mulf %29, %37 : vector<8x128xf32>
    %40 = arith.addf %38, %39 : vector<8x128xf32>
    %cst_21 = arith.constant dense<0.000000e+00> : vector<8xf32>
    %41 = vector.multi_reduction <add>, %40, %cst_21 [1] : vector<8x128xf32> to vector<8xf32>
    %42 = vector.shape_cast %41 : vector<8xf32> to vector<8x1xf32>
    %cst_22 = arith.constant 3.125000e-02 : f32
    %43 = vector.broadcast %cst_22 : f32 to vector<8x1xf32>
    %44 = arith.mulf %42, %43 : vector<8x1xf32>
    %45 = vector.broadcast %44 : vector<8x1xf32> to vector<8x128xf32>
    %46 = arith.subf %40, %45 : vector<8x128xf32>
    %47 = vector.broadcast %12 : vector<1x128xf32> to vector<8x128xf32>
    %48 = arith.mulf %46, %47 : vector<8x128xf32>
    %49 = arith.mulf %48, %48 : vector<8x128xf32>
    %cst_23 = arith.constant dense<0.000000e+00> : vector<8xf32>
    %50 = vector.multi_reduction <add>, %49, %cst_23 [1] : vector<8x128xf32> to vector<8xf32>
    %51 = vector.shape_cast %50 : vector<8xf32> to vector<8x1xf32>
    %cst_24 = arith.constant 3.125000e-02 : f32
    %52 = vector.broadcast %cst_24 : f32 to vector<8x1xf32>
    %53 = arith.mulf %51, %52 : vector<8x1xf32>
    %cst_25 = arith.constant 9.99999974E-6 : f32
    %54 = vector.broadcast %cst_25 : f32 to vector<8x1xf32>
    %55 = arith.addf %53, %54 : vector<8x1xf32>
    %56 = math.rsqrt %55 : vector<8x1xf32>
    %57 = vector.broadcast %56 : vector<8x1xf32> to vector<8x128xf32>
    %58 = arith.mulf %48, %57 : vector<8x128xf32>
    %59 = vector.broadcast %2 : vector<1x128xf32> to vector<8x128xf32>
    %60 = arith.mulf %58, %59 : vector<8x128xf32>
    %61 = vector.broadcast %3 : vector<1x128xf32> to vector<8x128xf32>
    %62 = arith.addf %60, %61 : vector<8x128xf32>
    %c0_26 = arith.constant 0 : index
    %c0_27 = arith.constant 0 : index
    %63 = vector.load %arg5[%c0_26, %c0_27] : memref<128x128xf32, #tpu.memory_space<vmem>>, vector<128x128xf32>
    %cst_28 = arith.constant dense<0.000000e+00> : vector<8x128xf32>
    %64 = tpu.matmul %62, %63, %cst_28 {dimension_numbers = #tpu.dot_dimension_numbers<[1], [0], [0], [1], [0, 0, 1, 1], [], []>} : vector<8x128xf32>, vector<128x128xf32>, vector<8x128xf32> -> vector<8x128xf32>
    %65 = vector.broadcast %1 : vector<1x128xf32> to vector<8x128xf32>
    %66 = arith.addf %64, %65 : vector<8x128xf32>
    %67 = vector.extract_strided_slice %21 {offsets = [0, 384], sizes = [8, 128], strides = [1, 1]} : vector<8x640xf32> to vector<8x128xf32>
    %68 = arith.negf %67 : vector<8x128xf32>
    %69 = math.exp %68 : vector<8x128xf32>
    %cst_29 = arith.constant 1.000000e+00 : f32
    %70 = vector.broadcast %cst_29 : f32 to vector<8x128xf32>
    %71 = arith.addf %70, %69 : vector<8x128xf32>
    %72 = arith.divf %70, %71 : vector<8x128xf32>
    %cst_30 = arith.constant 1.000000e+00 : f32
    %73 = vector.broadcast %cst_30 : f32 to vector<8x128xf32>
    %74 = arith.subf %73, %72 : vector<8x128xf32>
    %75 = arith.mulf %74, %22 : vector<8x128xf32>
    %76 = arith.mulf %72, %66 : vector<8x128xf32>
    %77 = arith.addf %75, %76 : vector<8x128xf32>
    %cst_31 = arith.constant dense<0.000000e+00> : vector<8xf32>
    %78 = vector.multi_reduction <add>, %77, %cst_31 [1] : vector<8x128xf32> to vector<8xf32>
    %79 = vector.shape_cast %78 : vector<8xf32> to vector<8x1xf32>
    %cst_32 = arith.constant 3.125000e-02 : f32
    %80 = vector.broadcast %cst_32 : f32 to vector<8x1xf32>
    %81 = arith.mulf %79, %80 : vector<8x1xf32>
    %82 = vector.broadcast %81 : vector<8x1xf32> to vector<8x128xf32>
    %83 = arith.subf %77, %82 : vector<8x128xf32>
    %84 = vector.broadcast %12 : vector<1x128xf32> to vector<8x128xf32>
    %85 = arith.mulf %83, %84 : vector<8x128xf32>
    %86 = arith.mulf %85, %85 : vector<8x128xf32>
    %cst_33 = arith.constant dense<0.000000e+00> : vector<8xf32>
    %87 = vector.multi_reduction <add>, %86, %cst_33 [1] : vector<8x128xf32> to vector<8xf32>
    %88 = vector.shape_cast %87 : vector<8xf32> to vector<8x1xf32>
    %cst_34 = arith.constant 3.125000e-02 : f32
    %89 = vector.broadcast %cst_34 : f32 to vector<8x1xf32>
    %90 = arith.mulf %88, %89 : vector<8x1xf32>
    %cst_35 = arith.constant 9.99999974E-6 : f32
    %91 = vector.broadcast %cst_35 : f32 to vector<8x1xf32>
    %92 = arith.addf %90, %91 : vector<8x1xf32>
    %93 = math.rsqrt %92 : vector<8x1xf32>
    %94 = vector.broadcast %93 : vector<8x1xf32> to vector<8x128xf32>
    %95 = arith.mulf %85, %94 : vector<8x128xf32>
    %96 = vector.broadcast %4 : vector<1x128xf32> to vector<8x128xf32>
    %97 = arith.mulf %95, %96 : vector<8x128xf32>
    %98 = vector.broadcast %5 : vector<1x128xf32> to vector<8x128xf32>
    %99 = arith.addf %97, %98 : vector<8x128xf32>
    %100 = vector.extract_strided_slice %21 {offsets = [0, 256], sizes = [8, 128], strides = [1, 1]} : vector<8x640xf32> to vector<8x128xf32>
    %101 = arith.negf %100 : vector<8x128xf32>
    %102 = math.exp %101 : vector<8x128xf32>
    %cst_36 = arith.constant 1.000000e+00 : f32
    %103 = vector.broadcast %cst_36 : f32 to vector<8x128xf32>
    %104 = arith.addf %103, %102 : vector<8x128xf32>
    %105 = arith.divf %103, %104 : vector<8x128xf32>
    %106 = arith.addf %62, %99 : vector<8x128xf32>
    %107 = math.tanh %106 : vector<8x128xf32>
    %108 = arith.mulf %105, %107 : vector<8x128xf32>
    %cst_37 = arith.constant dense<0.000000e+00> : vector<8xf32>
    %109 = vector.multi_reduction <add>, %108, %cst_37 [1] : vector<8x128xf32> to vector<8xf32>
    %110 = vector.shape_cast %109 : vector<8xf32> to vector<8x1xf32>
    %cst_38 = arith.constant 3.125000e-02 : f32
    %111 = vector.broadcast %cst_38 : f32 to vector<8x1xf32>
    %112 = arith.mulf %110, %111 : vector<8x1xf32>
    %113 = vector.broadcast %112 : vector<8x1xf32> to vector<8x128xf32>
    %114 = arith.subf %108, %113 : vector<8x128xf32>
    %115 = vector.broadcast %12 : vector<1x128xf32> to vector<8x128xf32>
    %116 = arith.mulf %114, %115 : vector<8x128xf32>
    %117 = arith.mulf %116, %116 : vector<8x128xf32>
    %cst_39 = arith.constant dense<0.000000e+00> : vector<8xf32>
    %118 = vector.multi_reduction <add>, %117, %cst_39 [1] : vector<8x128xf32> to vector<8xf32>
    %119 = vector.shape_cast %118 : vector<8xf32> to vector<8x1xf32>
    %cst_40 = arith.constant 3.125000e-02 : f32
    %120 = vector.broadcast %cst_40 : f32 to vector<8x1xf32>
    %121 = arith.mulf %119, %120 : vector<8x1xf32>
    %cst_41 = arith.constant 9.99999974E-6 : f32
    %122 = vector.broadcast %cst_41 : f32 to vector<8x1xf32>
    %123 = arith.addf %121, %122 : vector<8x1xf32>
    %124 = math.rsqrt %123 : vector<8x1xf32>
    %125 = vector.broadcast %124 : vector<8x1xf32> to vector<8x128xf32>
    %126 = arith.mulf %116, %125 : vector<8x128xf32>
    %127 = vector.broadcast %6 : vector<1x128xf32> to vector<8x128xf32>
    %128 = arith.mulf %126, %127 : vector<8x128xf32>
    %129 = vector.broadcast %7 : vector<1x128xf32> to vector<8x128xf32>
    %130 = arith.addf %128, %129 : vector<8x128xf32>
    %c0_42 = arith.constant 0 : index
    %c0_43 = arith.constant 0 : index
    %131 = vector.load %arg7[%c0_42, %c0_43] : memref<8x384xf32, #tpu.memory_space<vmem>>, vector<8x128xf32>
    tpu.vector_store %arg7[%c0_42, %c0_43], %130 {strides = array<i32>} : memref<8x384xf32, #tpu.memory_space<vmem>>, vector<8x128xf32>,
    %c0_44 = arith.constant 0 : index
    %c128_45 = arith.constant 128 : index
    %132 = vector.load %arg7[%c0_44, %c128_45] : memref<8x384xf32, #tpu.memory_space<vmem>>, vector<8x128xf32>
    tpu.vector_store %arg7[%c0_44, %c128_45], %99 {strides = array<i32>} : memref<8x384xf32, #tpu.memory_space<vmem>>, vector<8x128xf32>,
    %c0_46 = arith.constant 0 : index
    %c256_47 = arith.constant 256 : index
    %133 = vector.load %arg7[%c0_46, %c256_47] : memref<8x384xf32, #tpu.memory_space<vmem>>, vector<8x128xf32>
    tpu.vector_store %arg7[%c0_46, %c256_47], %62 {strides = array<i32>} : memref<8x384xf32, #tpu.memory_space<vmem>>, vector<8x128xf32>,
    return
  }
  func.func @transform_0(%arg0: i32) -> (i32, i32) {
    %c0_i32 = arith.constant 0 : i32
    %c0_i32_0 = arith.constant 0 : i32
    return %arg0, %c0_i32 : i32, i32
  }
  func.func @transform_1(%arg0: i32) -> (i32, i32) {
    %c0_i32 = arith.constant 0 : i32
    %c0_i32_0 = arith.constant 0 : i32
    return %arg0, %c0_i32 : i32, i32
  }
  func.func @transform_2(%arg0: i32) -> (i32, i32) {
    %c0_i32 = arith.constant 0 : i32
    %c0_i32_0 = arith.constant 0 : i32
    %c0_i32_1 = arith.constant 0 : i32
    return %c0_i32, %c0_i32_0 : i32, i32
  }
  func.func @transform_3(%arg0: i32) -> (i32, i32) {
    %c0_i32 = arith.constant 0 : i32
    %c0_i32_0 = arith.constant 0 : i32
    %c0_i32_1 = arith.constant 0 : i32
    return %c0_i32, %c0_i32_0 : i32, i32
  }
  func.func @transform_4(%arg0: i32) -> (i32, i32) {
    %c0_i32 = arith.constant 0 : i32
    %c0_i32_0 = arith.constant 0 : i32
    %c0_i32_1 = arith.constant 0 : i32
    return %c0_i32, %c0_i32_0 : i32, i32
  }
  func.func @transform_5(%arg0: i32) -> (i32, i32) {
    %c0_i32 = arith.constant 0 : i32
    %c0_i32_0 = arith.constant 0 : i32
    %c0_i32_1 = arith.constant 0 : i32
    return %c0_i32, %c0_i32_0 : i32, i32
  }
  func.func @transform_6(%arg0: i32) -> (i32, i32) {
    %c0_i32 = arith.constant 0 : i32
    %c0_i32_0 = arith.constant 0 : i32
    return %arg0, %c0_i32 : i32, i32
  }
}

</mosaic_0001>

<llo_original>
// kernel: _lambda_.1
$region0: #{_lambda_.1}
  #allocation0 [shape = 'u32[]', space=smem, size = 0x4, offset = 0x4, fixed_abs, tag = 'smem constant byte address 0x4 - core index']
  #allocation1 [shape = 'u32[144,128]{1,0:T(1,128)}', space=vmem, size = 0x12000, scoped, tag = 'internal scratch']
  %s0 = inlined_call_operand.vmem [shape: f32[8,16], index: 0, kind: input, shape index: {}]
  %s1 = inlined_call_operand.vmem [shape: f32[8,384], index: 1, kind: input, shape index: {}, may-alias: {1,6}]
  %s2 = inlined_call_operand.hbm [shape: f32[16,640], index: 2, kind: input, shape index: {}]
  %s3 = inlined_call_operand.hbm [shape: f32[256,640], index: 3, kind: input, shape index: {}]
  %s4 = inlined_call_operand.vmem [shape: f32[128,128], index: 4, kind: input, shape index: {}]
  %s5 = inlined_call_operand.vmem [shape: f32[1,1536], index: 5, kind: input, shape index: {}]
  %s6 = inlined_call_operand.vmem [shape: f32[8,384], index: 6, kind: output, shape index: {}, may-alias: {1,6}]
  %s7 = sld [smem:[#allocation0]]
  $region42: #{_lambda_.1} parent=0
    _
  %s9 = ssub.s32 1, %s7
  %s10 = scalar_select 0, %s9, %s7
  $region1: #{_lambda_.1} parent=0
    #allocation2 [shape = 'u8[40960]{0}', space=vmem, size = 0xa000, scoped, tag = 'input window, operand 2, single buffered']
    #allocation3 [shape = 's32[1]{0}', space=sflag, size = 0x4, scoped, tag = 'scoped memory for _lambda_.1']
    #allocation4 [shape = 'u8[655360]{0}', space=vmem, size = 0xa0000, scoped, tag = 'input window, operand 3, single buffered']
    #allocation5 [shape = 's32[1]{0}', space=sflag, size = 0x4, scoped, tag = 'scoped memory for _lambda_.1']
    %11 = vsyncpa [#allocation3], 0
    %12 = vsyncpa [#allocation5], 0
    // Predicated region
    $region2: #{_lambda_.1} parent=1 // pred_check
      _
    $region3: #{_lambda_.1} parent=1 // pred_check_branch
      %14 = sbr.rel (0) target = $region5
    $region4: #{_lambda_.1} parent=1 // pred_region
      _
    $region5: #{_lambda_.1} parent=1 // pred_fallthru
      _
    // Predicated region
    $region6: #{_lambda_.1} parent=1 // pred_check
      _
    $region7: #{_lambda_.1} parent=1 // pred_check_branch
      %16 = sbr.rel (0) target = $region9
    $region8: #{_lambda_.1} parent=1 // pred_region
      _
    $region9: #{_lambda_.1} parent=1 // pred_fallthru
      _
    // Predicated region
    $region10: #{_lambda_.1} parent=1 // pred_check
      _
    $region11: #{_lambda_.1} parent=1 // pred_check_branch
      %18 = sbr.rel (0) target = $region13
    $region12: #{_lambda_.1} parent=1 // pred_region
      %s20 = ssub.s32 1280, 1280
      %21 = vsyncadd [#allocation3], %s20
      %s22 = sshll.u32 [#allocation2], 4
      %s23 = int_to_ptr.vmem [resolvable:$true] %s22
      %28 = dma.hbm_to_vmem [thread:$0]  %s2, 1280, %s23, [#allocation3], 640, 640, 40
    $region13: #{_lambda_.1} parent=1 // pred_fallthru
      _
    // Predicated region
    $region14: #{_lambda_.1} parent=1 // pred_check
      _
    $region15: #{_lambda_.1} parent=1 // pred_check_branch
      %30 = sbr.rel (0) target = $region17
    $region16: #{_lambda_.1} parent=1 // pred_region
      %s32 = ssub.s32 20480, 20480
      %33 = vsyncadd [#allocation5], %s32
      %s34 = sshll.u32 [#allocation4], 4
      %s35 = int_to_ptr.vmem [resolvable:$true] %s34
      %40 = dma.hbm_to_vmem [thread:$0]  %s3, 20480, %s35, [#allocation5], 640, 640, 40
    $region17: #{_lambda_.1} parent=1 // pred_fallthru
      _
    // Predicated region
    $region18: #{_lambda_.1} parent=1 // pred_check
      _
    $region19: #{_lambda_.1} parent=1 // pred_check_branch
      %42 = sbr.rel (0) target = $region21
    $region20: #{_lambda_.1} parent=1 // pred_region
      _
    $region21: #{_lambda_.1} parent=1 // pred_fallthru
      _
    // Predicated region
    $region22: #{_lambda_.1} parent=1 // pred_check
      _
    $region23: #{_lambda_.1} parent=1 // pred_check_branch
      %44 = sbr.rel (0) target = $region25
    $region24: #{_lambda_.1} parent=1 // pred_region
      _
    $region25: #{_lambda_.1} parent=1 // pred_fallthru
      _
    // Predicated region
    $region26: #{_lambda_.1} parent=1 // pred_check
      _
    $region27: #{_lambda_.1} parent=1 // pred_check_branch
      %46 = sbr.rel (0) target = $region29
    $region28: #{_lambda_.1} parent=1 // pred_region
      %47 = dma.done [#allocation3], 1280
    $region29: #{_lambda_.1} parent=1 // pred_fallthru
      _
    // Predicated region
    $region30: #{_lambda_.1} parent=1 // pred_check
      _
    $region31: #{_lambda_.1} parent=1 // pred_check_branch
      %49 = sbr.rel (0) target = $region33
    $region32: #{_lambda_.1} parent=1 // pred_region
      %50 = dma.done [#allocation5], 20480
    $region33: #{_lambda_.1} parent=1 // pred_fallthru
      _
    %v51 = vld [vmem:[%s5] sm:$0x1f]
    %v52 = vld [vmem:[%s5 + $0x5] sm:$0x1]
    %v53 = vld [vmem:[%s5 + $0x6] sm:$0x1]
    %v54 = vld [vmem:[%s5 + $0x7] sm:$0x1]
    %v55 = vld [vmem:[%s5 + $0x8] sm:$0x1]
    %v56 = vld [vmem:[%s5 + $0x9] sm:$0x1]
    %v57 = vld [vmem:[%s5 + $0xa] sm:$0x1]
    %v58 = vld [vmem:[%s5 + $0xb] sm:$0x1]
    %v59 = vlaneseq
    %v60 = vand.u32 %v59, 127
    %vm61 = vcmp.lt.s32.totalorder %v60, 32
    %v62 = vsel %vm61, 1, 0
    %v63 = vcvt.s32.f32 %v62
    %v64 = vld [vmem:[%s0] sm:$0xff]
    %v65 = vld [vmem:[#allocation2] sm:$0xff]
    %v66 = vld [vmem:[#allocation2 + $0x8] sm:$0xff]
    %v67 = vld [vmem:[#allocation2 + $0x10] sm:$0xff]
    %v68 = vld [vmem:[#allocation2 + $0x18] sm:$0xff]
    %v69 = vld [vmem:[#allocation2 + $0x20] sm:$0xff]
    %v70 = vld [vmem:[#allocation2 + $0x28] sm:$0xff]
    %v71 = vld [vmem:[#allocation2 + $0x30] sm:$0xff]
    %v72 = vld [vmem:[#allocation2 + $0x38] sm:$0xff]
    %v73 = vld [vmem:[#allocation2 + $0x40] sm:$0xff]
    %v74 = vld [vmem:[#allocation2 + $0x48] sm:$0xff]
    %v75 = vld [vmem:[%s1] sm:$0xff]
    %v76 = vld [vmem:[%s1 + $0x8] sm:$0xff]
    %v77 = vld [vmem:[#allocation4] sm:$0xff]
    %v78 = vld [vmem:[#allocation4 + $0x8] sm:$0xff]
    %v79 = vld [vmem:[#allocation4 + $0x10] sm:$0xff]
    %v80 = vld [vmem:[#allocation4 + $0x18] sm:$0xff]
    %v81 = vld [vmem:[#allocation4 + $0x20] sm:$0xff]
    %v82 = vld [vmem:[#allocation4 + $0x28] sm:$0xff]
    %v83 = vld [vmem:[#allocation4 + $0x30] sm:$0xff]
    %v84 = vld [vmem:[#allocation4 + $0x38] sm:$0xff]
    %v85 = vld [vmem:[#allocation4 + $0x40] sm:$0xff]
    %v86 = vld [vmem:[#allocation4 + $0x48] sm:$0xff]
    %v87 = vld [vmem:[#allocation4 + $0x50] sm:$0xff]
    %v88 = vld [vmem:[#allocation4 + $0x58] sm:$0xff]
    %v89 = vld [vmem:[#allocation4 + $0x60] sm:$0xff]
    %v90 = vld [vmem:[#allocation4 + $0x68] sm:$0xff]
    %v91 = vld [vmem:[#allocation4 + $0x70] sm:$0xff]
    %v92 = vld [vmem:[#allocation4 + $0x78] sm:$0xff]
    %v93 = vld [vmem:[#allocation4 + $0x80] sm:$0xff]
    %v94 = vld [vmem:[#allocation4 + $0x88] sm:$0xff]
    %v95 = vld [vmem:[#allocation4 + $0x90] sm:$0xff]
    %v96 = vld [vmem:[#allocation4 + $0x98] sm:$0xff]
    %v97 = vld [vmem:[#allocation4 + $0xa0] sm:$0xff]
    %v98 = vld [vmem:[#allocation4 + $0xa8] sm:$0xff]
    %v99 = vld [vmem:[#allocation4 + $0xb0] sm:$0xff]
    %v100 = vld [vmem:[#allocation4 + $0xb8] sm:$0xff]
    %v101 = vld [vmem:[#allocation4 + $0xc0] sm:$0xff]
    %v102 = vld [vmem:[#allocation4 + $0xc8] sm:$0xff]
    %v103 = vld [vmem:[#allocation4 + $0xd0] sm:$0xff]
    %v104 = vld [vmem:[#allocation4 + $0xd8] sm:$0xff]
    %v105 = vld [vmem:[#allocation4 + $0xe0] sm:$0xff]
    %v106 = vld [vmem:[#allocation4 + $0xe8] sm:$0xff]
    %v107 = vld [vmem:[#allocation4 + $0xf0] sm:$0xff]
    %v108 = vld [vmem:[#allocation4 + $0xf8] sm:$0xff]
    %v109 = vld [vmem:[#allocation4 + $0x100] sm:$0xff]
    %v110 = vld [vmem:[#allocation4 + $0x108] sm:$0xff]
    %v111 = vld [vmem:[#allocation4 + $0x110] sm:$0xff]
    %v112 = vld [vmem:[#allocation4 + $0x118] sm:$0xff]
    %v113 = vld [vmem:[#allocation4 + $0x120] sm:$0xff]
    %v114 = vld [vmem:[#allocation4 + $0x128] sm:$0xff]
    %v115 = vld [vmem:[#allocation4 + $0x130] sm:$0xff]
    %v116 = vld [vmem:[#allocation4 + $0x138] sm:$0xff]
    %v117 = vld [vmem:[#allocation4 + $0x140] sm:$0xff]
    %v118 = vld [vmem:[#allocation4 + $0x148] sm:$0xff]
    %v119 = vld [vmem:[#allocation4 + $0x150] sm:$0xff]
    %v120 = vld [vmem:[#allocation4 + $0x158] sm:$0xff]
    %v121 = vld [vmem:[#allocation4 + $0x160] sm:$0xff]
    %v122 = vld [vmem:[#allocation4 + $0x168] sm:$0xff]
    %v123 = vld [vmem:[#allocation4 + $0x170] sm:$0xff]
    %v124 = vld [vmem:[#allocation4 + $0x178] sm:$0xff]
    %v125 = vld [vmem:[#allocation4 + $0x180] sm:$0xff]
    %v126 = vld [vmem:[#allocation4 + $0x188] sm:$0xff]
    %v127 = vld [vmem:[#allocation4 + $0x190] sm:$0xff]
    %v128 = vld [vmem:[#allocation4 + $0x198] sm:$0xff]
    %v129 = vld [vmem:[#allocation4 + $0x1a0] sm:$0xff]
    %v130 = vld [vmem:[#allocation4 + $0x1a8] sm:$0xff]
    %v131 = vld [vmem:[#allocation4 + $0x1b0] sm:$0xff]
    %v132 = vld [vmem:[#allocation4 + $0x1b8] sm:$0xff]
    %v133 = vld [vmem:[#allocation4 + $0x1c0] sm:$0xff]
    %v134 = vld [vmem:[#allocation4 + $0x1c8] sm:$0xff]
    %v135 = vld [vmem:[#allocation4 + $0x1d0] sm:$0xff]
    %v136 = vld [vmem:[#allocation4 + $0x1d8] sm:$0xff]
    %v137 = vld [vmem:[#allocation4 + $0x1e0] sm:$0xff]
    %v138 = vld [vmem:[#allocation4 + $0x1e8] sm:$0xff]
    %v139 = vld [vmem:[#allocation4 + $0x1f0] sm:$0xff]
    %v140 = vld [vmem:[#allocation4 + $0x1f8] sm:$0xff]
    %v141 = vld [vmem:[#allocation4 + $0x200] sm:$0xff]
    %v142 = vld [vmem:[#allocation4 + $0x208] sm:$0xff]
    %v143 = vld [vmem:[#allocation4 + $0x210] sm:$0xff]
    %v144 = vld [vmem:[#allocation4 + $0x218] sm:$0xff]
    %v145 = vld [vmem:[#allocation4 + $0x220] sm:$0xff]
    %v146 = vld [vmem:[#allocation4 + $0x228] sm:$0xff]
    %v147 = vld [vmem:[#allocation4 + $0x230] sm:$0xff]
    %v148 = vld [vmem:[#allocation4 + $0x238] sm:$0xff]
    %v149 = vld [vmem:[#allocation4 + $0x240] sm:$0xff]
    %v150 = vld [vmem:[#allocation4 + $0x248] sm:$0xff]
    %v151 = vld [vmem:[#allocation4 + $0x250] sm:$0xff]
    %v152 = vld [vmem:[#allocation4 + $0x258] sm:$0xff]
    %v153 = vld [vmem:[#allocation4 + $0x260] sm:$0xff]
    %v154 = vld [vmem:[#allocation4 + $0x268] sm:$0xff]
    %v155 = vld [vmem:[#allocation4 + $0x270] sm:$0xff]
    %v156 = vld [vmem:[#allocation4 + $0x278] sm:$0xff]
    %v157 = vld [vmem:[#allocation4 + $0x280] sm:$0xff]
    %v158 = vld [vmem:[#allocation4 + $0x288] sm:$0xff]
    %v159 = vld [vmem:[#allocation4 + $0x290] sm:$0xff]
    %v160 = vld [vmem:[#allocation4 + $0x298] sm:$0xff]
    %v161 = vld [vmem:[#allocation4 + $0x2a0] sm:$0xff]
    %v162 = vld [vmem:[#allocation4 + $0x2a8] sm:$0xff]
    %v163 = vld [vmem:[#allocation4 + $0x2b0] sm:$0xff]
    %v164 = vld [vmem:[#allocation4 + $0x2b8] sm:$0xff]
    %v165 = vld [vmem:[#allocation4 + $0x2c0] sm:$0xff]
    %v166 = vld [vmem:[#allocation4 + $0x2c8] sm:$0xff]
    %v167 = vld [vmem:[#allocation4 + $0x2d0] sm:$0xff]
    %v168 = vld [vmem:[#allocation4 + $0x2d8] sm:$0xff]
    %v169 = vld [vmem:[#allocation4 + $0x2e0] sm:$0xff]
    %v170 = vld [vmem:[#allocation4 + $0x2e8] sm:$0xff]
    %v171 = vld [vmem:[#allocation4 + $0x2f0] sm:$0xff]
    %v172 = vld [vmem:[#allocation4 + $0x2f8] sm:$0xff]
    %v173 = vld [vmem:[#allocation4 + $0x300] sm:$0xff]
    %v174 = vld [vmem:[#allocation4 + $0x308] sm:$0xff]
    %v175 = vld [vmem:[#allocation4 + $0x310] sm:$0xff]
    %v176 = vld [vmem:[#allocation4 + $0x318] sm:$0xff]
    %v177 = vld [vmem:[#allocation4 + $0x320] sm:$0xff]
    %v178 = vld [vmem:[#allocation4 + $0x328] sm:$0xff]
    %v179 = vld [vmem:[#allocation4 + $0x330] sm:$0xff]
    %v180 = vld [vmem:[#allocation4 + $0x338] sm:$0xff]
    %v181 = vld [vmem:[#allocation4 + $0x340] sm:$0xff]
    %v182 = vld [vmem:[#allocation4 + $0x348] sm:$0xff]
    %v183 = vld [vmem:[#allocation4 + $0x350] sm:$0xff]
    %v184 = vld [vmem:[#allocation4 + $0x358] sm:$0xff]
    %v185 = vld [vmem:[#allocation4 + $0x360] sm:$0xff]
    %v186 = vld [vmem:[#allocation4 + $0x368] sm:$0xff]
    %v187 = vld [vmem:[#allocation4 + $0x370] sm:$0xff]
    %v188 = vld [vmem:[#allocation4 + $0x378] sm:$0xff]
    %v189 = vld [vmem:[#allocation4 + $0x380] sm:$0xff]
    %v190 = vld [vmem:[#allocation4 + $0x388] sm:$0xff]
    %v191 = vld [vmem:[#allocation4 + $0x390] sm:$0xff]
    %v192 = vld [vmem:[#allocation4 + $0x398] sm:$0xff]
    %v193 = vld [vmem:[#allocation4 + $0x3a0] sm:$0xff]
    %v194 = vld [vmem:[#allocation4 + $0x3a8] sm:$0xff]
    %v195 = vld [vmem:[#allocation4 + $0x3b0] sm:$0xff]
    %v196 = vld [vmem:[#allocation4 + $0x3b8] sm:$0xff]
    %v197 = vld [vmem:[#allocation4 + $0x3c0] sm:$0xff]
    %v198 = vld [vmem:[#allocation4 + $0x3c8] sm:$0xff]
    %v199 = vld [vmem:[#allocation4 + $0x3d0] sm:$0xff]
    %v200 = vld [vmem:[#allocation4 + $0x3d8] sm:$0xff]
    %v201 = vld [vmem:[#allocation4 + $0x3e0] sm:$0xff]
    %v202 = vld [vmem:[#allocation4 + $0x3e8] sm:$0xff]
    %v203 = vld [vmem:[#allocation4 + $0x3f0] sm:$0xff]
    %v204 = vld [vmem:[#allocation4 + $0x3f8] sm:$0xff]
    %v205 = vld [vmem:[#allocation4 + $0x400] sm:$0xff]
    %v206 = vld [vmem:[#allocation4 + $0x408] sm:$0xff]
    %v207 = vld [vmem:[#allocation4 + $0x410] sm:$0xff]
    %v208 = vld [vmem:[#allocation4 + $0x418] sm:$0xff]
    %v209 = vld [vmem:[#allocation4 + $0x420] sm:$0xff]
    %v210 = vld [vmem:[#allocation4 + $0x428] sm:$0xff]
    %v211 = vld [vmem:[#allocation4 + $0x430] sm:$0xff]
    %v212 = vld [vmem:[#allocation4 + $0x438] sm:$0xff]
    %v213 = vld [vmem:[#allocation4 + $0x440] sm:$0xff]
    %v214 = vld [vmem:[#allocation4 + $0x448] sm:$0xff]
    %v215 = vld [vmem:[#allocation4 + $0x450] sm:$0xff]
    %v216 = vld [vmem:[#allocation4 + $0x458] sm:$0xff]
    %v217 = vld [vmem:[#allocation4 + $0x460] sm:$0xff]
    %v218 = vld [vmem:[#allocation4 + $0x468] sm:$0xff]
    %v219 = vld [vmem:[#allocation4 + $0x470] sm:$0xff]
    %v220 = vld [vmem:[#allocation4 + $0x478] sm:$0xff]
    %v221 = vld [vmem:[#allocation4 + $0x480] sm:$0xff]
    %v222 = vld [vmem:[#allocation4 + $0x488] sm:$0xff]
    %v223 = vld [vmem:[#allocation4 + $0x490] sm:$0xff]
    %v224 = vld [vmem:[#allocation4 + $0x498] sm:$0xff]
    %v225 = vld [vmem:[#allocation4 + $0x4a0] sm:$0xff]
    %v226 = vld [vmem:[#allocation4 + $0x4a8] sm:$0xff]
    %v227 = vld [vmem:[#allocation4 + $0x4b0] sm:$0xff]
    %v228 = vld [vmem:[#allocation4 + $0x4b8] sm:$0xff]
    %v229 = vld [vmem:[#allocation4 + $0x4c0] sm:$0xff]
    %v230 = vld [vmem:[#allocation4 + $0x4c8] sm:$0xff]
    %v231 = vld [vmem:[#allocation4 + $0x4d0] sm:$0xff]
    %v232 = vld [vmem:[#allocation4 + $0x4d8] sm:$0xff]
    %v233 = vld [vmem:[#allocation4 + $0x4e0] sm:$0xff]
    %v234 = vld [vmem:[#allocation4 + $0x4e8] sm:$0xff]
    %v235 = vld [vmem:[#allocation4 + $0x4f0] sm:$0xff]
    %v236 = vld [vmem:[#allocation4 + $0x4f8] sm:$0xff]
    %237 = vmatprep.subr.mxu0 %v78
    %238 = vmatpush1.msra.mxu0 %v77
    %239 = vmatprep.subr.mxu0 %v83
    %240 = vmatpush1.msra.mxu0 %v82
    %241 = vmatprep.subr.mxu0 %v88
    %242 = vmatpush1.msra.mxu0 %v87
    %243 = vmatprep.subr.mxu0 %v93
    %244 = vmatpush1.msra.mxu0 %v92
    %245 = vmatprep.subr.mxu0 %v98
    %246 = vmatpush1.msra.mxu0 %v97
    %247 = vmatprep.subr.mxu0 %v103
    %248 = vmatpush1.msra.mxu0 %v102
    %249 = vmatprep.subr.mxu0 %v108
    %250 = vmatpush1.msra.mxu0 %v107
    %251 = vmatprep.subr.mxu0 %v113
    %252 = vmatpush1.msra.mxu0 %v112
    %253 = vmatprep.subr.mxu0 %v118
    %254 = vmatpush1.msra.mxu0 %v117
    %255 = vmatprep.subr.mxu0 %v123
    %256 = vmatpush1.msra.mxu0 %v122
    %257 = vmatprep.subr.mxu0 %v128
    %258 = vmatpush1.msra.mxu0 %v127
    %259 = vmatprep.subr.mxu0 %v133
    %260 = vmatpush1.msra.mxu0 %v132
    %261 = vmatprep.subr.mxu0 %v138
    %262 = vmatpush1.msra.mxu0 %v137
    %263 = vmatprep.subr.mxu0 %v143
    %264 = vmatpush1.msra.mxu0 %v142
    %265 = vmatprep.subr.mxu0 %v148
    %266 = vmatpush1.msra.mxu0 %v147
    %267 = vmatprep.subr.mxu0 %v153
    %268 = vmatpush1.msra.mxu0 %v152
    %269 = vmatprep.subr.mxu0 %v158
    %270 = vmatpush1.msra.mxu0 %v157
    %271 = vmatprep.subr.mxu0 %v163
    %272 = vmatpush1.msra.mxu0 %v162
    %273 = vmatprep.subr.mxu0 %v168
    %274 = vmatpush1.msra.mxu0 %v167
    %275 = vmatprep.subr.mxu0 %v173
    %276 = vmatpush1.msra.mxu0 %v172
    %277 = vmatprep.subr.mxu0 %v178
    %278 = vmatpush1.msra.mxu0 %v177
    %279 = vmatprep.subr.mxu0 %v183
    %280 = vmatpush1.msra.mxu0 %v182
    %281 = vmatprep.subr.mxu0 %v188
    %282 = vmatpush1.msra.mxu0 %v187
    %283 = vmatprep.subr.mxu0 %v193
    %284 = vmatpush1.msra.mxu0 %v192
    %285 = vmatprep.subr.mxu0 %v198
    %286 = vmatpush1.msra.mxu0 %v197
    %287 = vmatprep.subr.mxu0 %v203
    %288 = vmatpush1.msra.mxu0 %v202
    %289 = vmatprep.subr.mxu0 %v208
    %290 = vmatpush1.msra.mxu0 %v207
    %291 = vmatprep.subr.mxu0 %v213
    %292 = vmatpush1.msra.mxu0 %v212
    %293 = vmatprep.subr.mxu0 %v218
    %294 = vmatpush1.msra.mxu0 %v217
    %295 = vmatprep.subr.mxu0 %v223
    %296 = vmatpush1.msra.mxu0 %v222
    %297 = vmatprep.subr.mxu0 %v228
    %298 = vmatpush1.msra.mxu0 %v227
    %299 = vmatprep.subr.mxu0 %v233
    %300 = vmatpush1.msra.mxu0 %v232
    %301 = vmatprep.mubr.f32.mxu0 %v76
    %302 = vmatmul.mubr.f32.gmra.mrb[0].mxu0 %v75
    %v303 = vpop.f32.mrb[0].mxu0
    %v304 = vadd.f32 0.0, %v303
    %v305 = vpop.f32.mrb[0].mxu0
    %v306 = vadd.f32 0.0, %v305
    %307 = vdwg.mxu0
    %308 = vmatprep.subr.mxu0 %v80
    %309 = vmatpush1.msra.mxu0 %v79
    %310 = vmatprep.subr.mxu0 %v85
    %311 = vmatpush1.msra.mxu0 %v84
    %312 = vmatprep.subr.mxu0 %v90
    %313 = vmatpush1.msra.mxu0 %v89
    %314 = vmatprep.subr.mxu0 %v95
    %315 = vmatpush1.msra.mxu0 %v94
    %316 = vmatprep.subr.mxu0 %v100
    %317 = vmatpush1.msra.mxu0 %v99
    %318 = vmatprep.subr.mxu0 %v105
    %319 = vmatpush1.msra.mxu0 %v104
    %320 = vmatprep.subr.mxu0 %v110
    %321 = vmatpush1.msra.mxu0 %v109
    %322 = vmatprep.subr.mxu0 %v115
    %323 = vmatpush1.msra.mxu0 %v114
    %324 = vmatprep.subr.mxu0 %v120
    %325 = vmatpush1.msra.mxu0 %v119
    %326 = vmatprep.subr.mxu0 %v125
    %327 = vmatpush1.msra.mxu0 %v124
    %328 = vmatprep.subr.mxu0 %v130
    %329 = vmatpush1.msra.mxu0 %v129
    %330 = vmatprep.subr.mxu0 %v135
    %331 = vmatpush1.msra.mxu0 %v134
    %332 = vmatprep.subr.mxu0 %v140
    %333 = vmatpush1.msra.mxu0 %v139
    %334 = vmatprep.subr.mxu0 %v145
    %335 = vmatpush1.msra.mxu0 %v144
    %336 = vmatprep.subr.mxu0 %v150
    %337 = vmatpush1.msra.mxu0 %v149
    %338 = vmatprep.subr.mxu0 %v155
    %339 = vmatpush1.msra.mxu0 %v154
    %340 = vmatprep.subr.mxu0 %v160
    %341 = vmatpush1.msra.mxu0 %v159
    %342 = vmatprep.subr.mxu0 %v165
    %343 = vmatpush1.msra.mxu0 %v164
    %344 = vmatprep.subr.mxu0 %v170
    %345 = vmatpush1.msra.mxu0 %v169
    %346 = vmatprep.subr.mxu0 %v175
    %347 = vmatpush1.msra.mxu0 %v174
    %348 = vmatprep.subr.mxu0 %v180
    %349 = vmatpush1.msra.mxu0 %v179
    %350 = vmatprep.subr.mxu0 %v185
    %351 = vmatpush1.msra.mxu0 %v184
    %352 = vmatprep.subr.mxu0 %v190
    %353 = vmatpush1.msra.mxu0 %v189
    %354 = vmatprep.subr.mxu0 %v195
    %355 = vmatpush1.msra.mxu0 %v194
    %356 = vmatprep.subr.mxu0 %v200
    %357 = vmatpush1.msra.mxu0 %v199
    %358 = vmatprep.subr.mxu0 %v205
    %359 = vmatpush1.msra.mxu0 %v204
    %360 = vmatprep.subr.mxu0 %v210
    %361 = vmatpush1.msra.mxu0 %v209
    %362 = vmatprep.subr.mxu0 %v215
    %363 = vmatpush1.msra.mxu0 %v214
    %364 = vmatprep.subr.mxu0 %v220
    %365 = vmatpush1.msra.mxu0 %v219
    %366 = vmatprep.subr.mxu0 %v225
    %367 = vmatpush1.msra.mxu0 %v224
    %368 = vmatprep.subr.mxu0 %v230
    %369 = vmatpush1.msra.mxu0 %v229
    %370 = vmatprep.subr.mxu0 %v235
    %371 = vmatpush1.msra.mxu0 %v234
    %372 = vmatprep.mubr.f32.mxu0 %v76
    %373 = vmatmul.mubr.f32.gmra.mrb[0].mxu0 %v75
    %v374 = vpop.f32.mrb[0].mxu0
    %v375 = vadd.f32 0.0, %v374
    %v376 = vpop.f32.mrb[0].mxu0
    %v377 = vadd.f32 0.0, %v376
    %378 = vdwg.mxu0
    %379 = vmatprep.subr.mxu0 0.0
    %380 = vmatpush1.msra.mxu0 %v81
    %381 = vmatprep.subr.mxu0 0.0
    %382 = vmatpush1.msra.mxu0 %v86
    %383 = vmatprep.subr.mxu0 0.0
    %384 = vmatpush1.msra.mxu0 %v91
    %385 = vmatprep.subr.mxu0 0.0
    %386 = vmatpush1.msra.mxu0 %v96
    %387 = vmatprep.subr.mxu0 0.0
    %388 = vmatpush1.msra.mxu0 %v101
    %389 = vmatprep.subr.mxu0 0.0
    %390 = vmatpush1.msra.mxu0 %v106
    %391 = vmatprep.subr.mxu0 0.0
    %392 = vmatpush1.msra.mxu0 %v111
    %393 = vmatprep.subr.mxu0 0.0
    %394 = vmatpush1.msra.mxu0 %v116
    %395 = vmatprep.subr.mxu0 0.0
    %396 = vmatpush1.msra.mxu0 %v121
    %397 = vmatprep.subr.mxu0 0.0
    %398 = vmatpush1.msra.mxu0 %v126
    %399 = vmatprep.subr.mxu0 0.0
    %400 = vmatpush1.msra.mxu0 %v131
    %401 = vmatprep.subr.mxu0 0.0
    %402 = vmatpush1.msra.mxu0 %v136
    %403 = vmatprep.subr.mxu0 0.0
    %404 = vmatpush1.msra.mxu0 %v141
    %405 = vmatprep.subr.mxu0 0.0
    %406 = vmatpush1.msra.mxu0 %v146
    %407 = vmatprep.subr.mxu0 0.0
    %408 = vmatpush1.msra.mxu0 %v151
    %409 = vmatprep.subr.mxu0 0.0
    %410 = vmatpush1.msra.mxu0 %v156
    %411 = vmatprep.subr.mxu0 0.0
    %412 = vmatpush1.msra.mxu0 %v161
    %413 = vmatprep.subr.mxu0 0.0
    %414 = vmatpush1.msra.mxu0 %v166
    %415 = vmatprep.subr.mxu0 0.0
    %416 = vmatpush1.msra.mxu0 %v171
    %417 = vmatprep.subr.mxu0 0.0
    %418 = vmatpush1.msra.mxu0 %v176
    %419 = vmatprep.subr.mxu0 0.0
    %420 = vmatpush1.msra.mxu0 %v181
    %421 = vmatprep.subr.mxu0 0.0
    %422 = vmatpush1.msra.mxu0 %v186
    %423 = vmatprep.subr.mxu0 0.0
    %424 = vmatpush1.msra.mxu0 %v191
    %425 = vmatprep.subr.mxu0 0.0
    %426 = vmatpush1.msra.mxu0 %v196
    %427 = vmatprep.subr.mxu0 0.0
    %428 = vmatpush1.msra.mxu0 %v201
    %429 = vmatprep.subr.mxu0 0.0
    %430 = vmatpush1.msra.mxu0 %v206
    %431 = vmatprep.subr.mxu0 0.0
    %432 = vmatpush1.msra.mxu0 %v211
    %433 = vmatprep.subr.mxu0 0.0
    %434 = vmatpush1.msra.mxu0 %v216
    %435 = vmatprep.subr.mxu0 0.0
    %436 = vmatpush1.msra.mxu0 %v221
    %437 = vmatprep.subr.mxu0 0.0
    %438 = vmatpush1.msra.mxu0 %v226
    %439 = vmatprep.subr.mxu0 0.0
    %440 = vmatpush1.msra.mxu0 %v231
    %441 = vmatprep.subr.mxu0 0.0
    %442 = vmatpush1.msra.mxu0 %v236
    %443 = vmatprep.mubr.f32.mxu0 %v76
    %444 = vmatmul.mubr.f32.gmra.mrb[0].mxu0 %v75
    %v445 = vpop.f32.mrb[0].mxu0
    %v446 = vadd.f32 0.0, %v445
    %v447 = vpop.f32.mrb[0].mxu0
    %448 = vdwg.mxu0
    %vm449 = vcmask 130048
    %v451 = vsel %vm449, %v64, 0
    %453 = vmatprep.subr.mxu0 %v66
    %454 = vmatpush1.msra.mxu0 %v65
    %455 = vmatprep.subr.mxu0 %v71
    %456 = vmatpush1.msra.mxu0 %v70
    %457 = vmatprep.subr.mxu0 0.0
    %458 = vmatpush1.msra.mxu0 0.0
    %459 = vmatprep.subr.mxu0 0.0
    %460 = vmatpush1.msra.mxu0 0.0
    %461 = vmatprep.subr.mxu0 0.0
    %462 = vmatpush1.msra.mxu0 0.0
    %463 = vmatprep.subr.mxu0 0.0
    %464 = vmatpush1.msra.mxu0 0.0
    %465 = vmatprep.subr.mxu0 0.0
    %466 = vmatpush1.msra.mxu0 0.0
    %467 = vmatprep.subr.mxu0 0.0
    %468 = vmatpush1.msra.mxu0 0.0
    %469 = vmatprep.subr.mxu0 0.0
    %470 = vmatpush1.msra.mxu0 0.0
    %471 = vmatprep.subr.mxu0 0.0
    %472 = vmatpush1.msra.mxu0 0.0
    %473 = vmatprep.subr.mxu0 0.0
    %474 = vmatpush1.msra.mxu0 0.0
    %475 = vmatprep.subr.mxu0 0.0
    %476 = vmatpush1.msra.mxu0 0.0
    %477 = vmatprep.subr.mxu0 0.0
    %478 = vmatpush1.msra.mxu0 0.0
    %479 = vmatprep.subr.mxu0 0.0
    %480 = vmatpush1.msra.mxu0 0.0
    %481 = vmatprep.subr.mxu0 0.0
    %482 = vmatpush1.msra.mxu0 0.0
    %483 = vmatprep.subr.mxu0 0.0
    %484 = vmatpush1.msra.mxu0 0.0
    %485 = vmatprep.subr.mxu0 0.0
    %486 = vmatpush1.msra.mxu0 0.0
    %487 = vmatprep.subr.mxu0 0.0
    %488 = vmatpush1.msra.mxu0 0.0
    %489 = vmatprep.subr.mxu0 0.0
    %490 = vmatpush1.msra.mxu0 0.0
    %491 = vmatprep.subr.mxu0 0.0
    %492 = vmatpush1.msra.mxu0 0.0
    %493 = vmatprep.subr.mxu0 0.0
    %494 = vmatpush1.msra.mxu0 0.0
    %495 = vmatprep.subr.mxu0 0.0
    %496 = vmatpush1.msra.mxu0 0.0
    %497 = vmatprep.subr.mxu0 0.0
    %498 = vmatpush1.msra.mxu0 0.0
    %499 = vmatprep.subr.mxu0 0.0
    %500 = vmatpush1.msra.mxu0 0.0
    %501 = vmatprep.subr.mxu0 0.0
    %502 = vmatpush1.msra.mxu0 0.0
    %503 = vmatprep.subr.mxu0 0.0
    %504 = vmatpush1.msra.mxu0 0.0
    %505 = vmatprep.subr.mxu0 0.0
    %506 = vmatpush1.msra.mxu0 0.0
    %507 = vmatprep.subr.mxu0 0.0
    %508 = vmatpush1.msra.mxu0 0.0
    %509 = vmatprep.subr.mxu0 0.0
    %510 = vmatpush1.msra.mxu0 0.0
    %511 = vmatprep.subr.mxu0 0.0
    %512 = vmatpush1.msra.mxu0 0.0
    %513 = vmatprep.subr.mxu0 0.0
    %514 = vmatpush1.msra.mxu0 0.0
    %515 = vmatprep.subr.mxu0 0.0
    %516 = vmatpush1.msra.mxu0 0.0
    %517 = vmatprep.mubr.f32.mxu0 0.0
    %518 = vmatmul.mubr.f32.gmra.mrb[0].mxu0 %v451
    %v519 = vpop.f32.mrb[0].mxu0
    %v520 = vadd.f32 %v304, %v519
    %v521 = vpop.f32.mrb[0].mxu0
    %v522 = vadd.f32 %v306, %v521
    %523 = vdwg.mxu0
    %524 = vmatprep.subr.mxu0 %v68
    %525 = vmatpush1.msra.mxu0 %v67
    %526 = vmatprep.subr.mxu0 %v73
    %527 = vmatpush1.msra.mxu0 %v72
    %528 = vmatprep.subr.mxu0 0.0
    %529 = vmatpush1.msra.mxu0 0.0
    %530 = vmatprep.subr.mxu0 0.0
    %531 = vmatpush1.msra.mxu0 0.0
    %532 = vmatprep.subr.mxu0 0.0
    %533 = vmatpush1.msra.mxu0 0.0
    %534 = vmatprep.subr.mxu0 0.0
    %535 = vmatpush1.msra.mxu0 0.0
    %536 = vmatprep.subr.mxu0 0.0
    %537 = vmatpush1.msra.mxu0 0.0
    %538 = vmatprep.subr.mxu0 0.0
    %539 = vmatpush1.msra.mxu0 0.0
    %540 = vmatprep.subr.mxu0 0.0
    %541 = vmatpush1.msra.mxu0 0.0
    %542 = vmatprep.subr.mxu0 0.0
    %543 = vmatpush1.msra.mxu0 0.0
    %544 = vmatprep.subr.mxu0 0.0
    %545 = vmatpush1.msra.mxu0 0.0
    %546 = vmatprep.subr.mxu0 0.0
    %547 = vmatpush1.msra.mxu0 0.0
    %548 = vmatprep.subr.mxu0 0.0
    %549 = vmatpush1.msra.mxu0 0.0
    %550 = vmatprep.subr.mxu0 0.0
    %551 = vmatpush1.msra.mxu0 0.0
    %552 = vmatprep.subr.mxu0 0.0
    %553 = vmatpush1.msra.mxu0 0.0
    %554 = vmatprep.subr.mxu0 0.0
    %555 = vmatpush1.msra.mxu0 0.0
    %556 = vmatprep.subr.mxu0 0.0
    %557 = vmatpush1.msra.mxu0 0.0
    %558 = vmatprep.subr.mxu0 0.0
    %559 = vmatpush1.msra.mxu0 0.0
    %560 = vmatprep.subr.mxu0 0.0
    %561 = vmatpush1.msra.mxu0 0.0
    %562 = vmatprep.subr.mxu0 0.0
    %563 = vmatpush1.msra.mxu0 0.0
    %564 = vmatprep.subr.mxu0 0.0
    %565 = vmatpush1.msra.mxu0 0.0
    %566 = vmatprep.subr.mxu0 0.0
    %567 = vmatpush1.msra.mxu0 0.0
    %568 = vmatprep.subr.mxu0 0.0
    %569 = vmatpush1.msra.mxu0 0.0
    %570 = vmatprep.subr.mxu0 0.0
    %571 = vmatpush1.msra.mxu0 0.0
    %572 = vmatprep.subr.mxu0 0.0
    %573 = vmatpush1.msra.mxu0 0.0
    %574 = vmatprep.subr.mxu0 0.0
    %575 = vmatpush1.msra.mxu0 0.0
    %576 = vmatprep.subr.mxu0 0.0
    %577 = vmatpush1.msra.mxu0 0.0
    %578 = vmatprep.subr.mxu0 0.0
    %579 = vmatpush1.msra.mxu0 0.0
    %580 = vmatprep.subr.mxu0 0.0
    %581 = vmatpush1.msra.mxu0 0.0
    %582 = vmatprep.subr.mxu0 0.0
    %583 = vmatpush1.msra.mxu0 0.0
    %584 = vmatprep.subr.mxu0 0.0
    %585 = vmatpush1.msra.mxu0 0.0
    %586 = vmatprep.subr.mxu0 0.0
    %587 = vmatpush1.msra.mxu0 0.0
    %588 = vmatprep.mubr.f32.mxu0 0.0
    %589 = vmatmul.mubr.f32.gmra.mrb[0].mxu0 %v451
    %v590 = vpop.f32.mrb[0].mxu0
    %v591 = vadd.f32 %v375, %v590
    %v592 = vpop.f32.mrb[0].mxu0
    %v593 = vadd.f32 %v377, %v592
    %594 = vdwg.mxu0
    %595 = vmatprep.subr.mxu0 0.0
    %596 = vmatpush1.msra.mxu0 %v69
    %597 = vmatprep.subr.mxu0 0.0
    %598 = vmatpush1.msra.mxu0 %v74
    %599 = vmatprep.subr.mxu0 0.0
    %600 = vmatpush1.msra.mxu0 0.0
    %601 = vmatprep.subr.mxu0 0.0
    %602 = vmatpush1.msra.mxu0 0.0
    %603 = vmatprep.subr.mxu0 0.0
    %604 = vmatpush1.msra.mxu0 0.0
    %605 = vmatprep.subr.mxu0 0.0
    %606 = vmatpush1.msra.mxu0 0.0
    %607 = vmatprep.subr.mxu0 0.0
    %608 = vmatpush1.msra.mxu0 0.0
    %609 = vmatprep.subr.mxu0 0.0
    %610 = vmatpush1.msra.mxu0 0.0
    %611 = vmatprep.subr.mxu0 0.0
    %612 = vmatpush1.msra.mxu0 0.0
    %613 = vmatprep.subr.mxu0 0.0
    %614 = vmatpush1.msra.mxu0 0.0
    %615 = vmatprep.subr.mxu0 0.0
    %616 = vmatpush1.msra.mxu0 0.0
    %617 = vmatprep.subr.mxu0 0.0
    %618 = vmatpush1.msra.mxu0 0.0
    %619 = vmatprep.subr.mxu0 0.0
    %620 = vmatpush1.msra.mxu0 0.0
    %621 = vmatprep.subr.mxu0 0.0
    %622 = vmatpush1.msra.mxu0 0.0
    %623 = vmatprep.subr.mxu0 0.0
    %624 = vmatpush1.msra.mxu0 0.0
    %625 = vmatprep.subr.mxu0 0.0
    %626 = vmatpush1.msra.mxu0 0.0
    %627 = vmatprep.subr.mxu0 0.0
    %628 = vmatpush1.msra.mxu0 0.0
    %629 = vmatprep.subr.mxu0 0.0
    %630 = vmatpush1.msra.mxu0 0.0
    %631 = vmatprep.subr.mxu0 0.0
    %632 = vmatpush1.msra.mxu0 0.0
    %633 = vmatprep.subr.mxu0 0.0
    %634 = vmatpush1.msra.mxu0 0.0
    %635 = vmatprep.subr.mxu0 0.0
    %636 = vmatpush1.msra.mxu0 0.0
    %637 = vmatprep.subr.mxu0 0.0
    %638 = vmatpush1.msra.mxu0 0.0
    %639 = vmatprep.subr.mxu0 0.0
    %640 = vmatpush1.msra.mxu0 0.0
    %641 = vmatprep.subr.mxu0 0.0
    %642 = vmatpush1.msra.mxu0 0.0
    %643 = vmatprep.subr.mxu0 0.0
    %644 = vmatpush1.msra.mxu0 0.0
    %645 = vmatprep.subr.mxu0 0.0
    %646 = vmatpush1.msra.mxu0 0.0
    %647 = vmatprep.subr.mxu0 0.0
    %648 = vmatpush1.msra.mxu0 0.0
    %649 = vmatprep.subr.mxu0 0.0
    %650 = vmatpush1.msra.mxu0 0.0
    %651 = vmatprep.subr.mxu0 0.0
    %652 = vmatpush1.msra.mxu0 0.0
    %653 = vmatprep.subr.mxu0 0.0
    %654 = vmatpush1.msra.mxu0 0.0
    %655 = vmatprep.subr.mxu0 0.0
    %656 = vmatpush1.msra.mxu0 0.0
    %657 = vmatprep.subr.mxu0 0.0
    %658 = vmatpush1.msra.mxu0 0.0
    %659 = vmatprep.mubr.f32.mxu0 0.0
    %660 = vmatmul.mubr.f32.gmra.mrb[0].mxu0 %v451
    %v661 = vpop.f32.mrb[0].mxu0
    %v662 = vadd.f32 %v446, %v661
    %v663 = vpop.f32.mrb[0].mxu0
    %664 = vdwg.mxu0
    %v666 = vlaneseq
    %v667 = vshrl.u32 %v666, 7
    %v668 = vsub.s32 0, %v667
    %v669 = vrot.slane %v51, %v668
    %v670 = vlaneseq
    %v671 = vshrl.u32 %v670, 7
    %v672 = vsub.s32 1, %v671
    %v673 = vrot.slane %v51, %v672
    %v674 = vlaneseq
    %v675 = vshrl.u32 %v674, 7
    %v676 = vsub.s32 2, %v675
    %v677 = vrot.slane %v51, %v676
    %v678 = vlaneseq
    %v679 = vshrl.u32 %v678, 7
    %v680 = vsub.s32 3, %v679
    %v681 = vrot.slane %v51, %v680
    %v682 = vlaneseq
    %v683 = vshrl.u32 %v682, 7
    %v684 = vsub.s32 4, %v683
    %v685 = vrot.slane %v51, %v684
    %v691 = vadd.f32 %v520, %v669
    %v692 = vadd.f32 %v522, %v673
    %v693 = vadd.f32 %v591, %v677
    %v694 = vadd.f32 %v593, %v681
    %v695 = vadd.f32 %v662, %v685
    %v696 = vld [vmem:[%s1 + $0x10] sm:$0xff]
    %v697 = vxor.u32 %v691, 2147483648
    %v698 = vmul.f32 %v697, 1.442695
    %v699 = vpow.pop %v698
    %v700 = vadd.f32 %v699, 1.0
    %v701 = vrcp.pop %v700
    %v702 = vmul.f32 1.0, %v701
    %v703 = vxor.u32 %v692, 2147483648
    %v704 = vmul.f32 %v703, 1.442695
    %v705 = vpow.pop %v704
    %v706 = vadd.f32 %v705, 1.0
    %v707 = vrcp.pop %v706
    %v708 = vmul.f32 1.0, %v707
    %v709 = vtanh.pop %v695
    %v710 = vmul.f32 %v708, %v696
    %v711 = vmul.f32 %v702, %v709
    %v712 = vadd.f32 %v710, %v711
    %713 = vadd.xlane.f32.xlu0 %v712
    %v714 = vpop.xlane.xlu0 %713
    %v715 = vmul.f32 %v714, 0.03125
    %v716 = vsub.f32 %v712, %v715
    %v717 = vmul.f32 %v716, %v63
    %v718 = vmul.f32 %v717, %v717
    %719 = vadd.xlane.f32.xlu0 %v718
    %v720 = vpop.xlane.xlu0 %719
    %v721 = vmul.f32 %v720, 0.03125
    %v722 = vadd.f32 %v721, 1e-05
    %v723 = vrsqrt.pop %v722
    %v724 = vmul.f32 %v717, %v723
    %v726 = vlaneseq
    %v727 = vshrl.u32 %v726, 7
    %v728 = vsub.s32 0, %v727
    %v729 = vrot.slane %v53, %v728
    %v731 = vmul.f32 %v724, %v729
    %v733 = vlaneseq
    %v734 = vshrl.u32 %v733, 7
    %v735 = vsub.s32 0, %v734
    %v736 = vrot.slane %v54, %v735
    %v738 = vadd.f32 %v731, %v736
    %v739 = vld [vmem:[%s4] sm:$0xff]
    %v740 = vld [vmem:[%s4 + $0x8] sm:$0xff]
    %v741 = vld [vmem:[%s4 + $0x10] sm:$0xff]
    %v742 = vld [vmem:[%s4 + $0x18] sm:$0xff]
    %v743 = vld [vmem:[%s4 + $0x20] sm:$0xff]
    %v744 = vld [vmem:[%s4 + $0x28] sm:$0xff]
    %v745 = vld [vmem:[%s4 + $0x30] sm:$0xff]
    %v746 = vld [vmem:[%s4 + $0x38] sm:$0xff]
    %v747 = vld [vmem:[%s4 + $0x40] sm:$0xff]
    %v748 = vld [vmem:[%s4 + $0x48] sm:$0xff]
    %v749 = vld [vmem:[%s4 + $0x50] sm:$0xff]
    %v750 = vld [vmem:[%s4 + $0x58] sm:$0xff]
    %v751 = vld [vmem:[%s4 + $0x60] sm:$0xff]
    %v752 = vld [vmem:[%s4 + $0x68] sm:$0xff]
    %v753 = vld [vmem:[%s4 + $0x70] sm:$0xff]
    %v754 = vld [vmem:[%s4 + $0x78] sm:$0xff]
    %v756 = vlaneseq
    %v757 = vshrl.u32 %v756, 7
    %v758 = vsub.s32 0, %v757
    %v759 = vrot.slane %v52, %v758
    %761 = vmatprep.subr.mxu0 0.0
    %762 = vmatpush1.msra.mxu0 %v739
    %763 = vmatprep.subr.mxu0 0.0
    %764 = vmatpush1.msra.mxu0 %v740
    %765 = vmatprep.subr.mxu0 0.0
    %766 = vmatpush1.msra.mxu0 %v741
    %767 = vmatprep.subr.mxu0 0.0
    %768 = vmatpush1.msra.mxu0 %v742
    %769 = vmatprep.subr.mxu0 0.0
    %770 = vmatpush1.msra.mxu0 %v743
    %771 = vmatprep.subr.mxu0 0.0
    %772 = vmatpush1.msra.mxu0 %v744
    %773 = vmatprep.subr.mxu0 0.0
    %774 = vmatpush1.msra.mxu0 %v745
    %775 = vmatprep.subr.mxu0 0.0
    %776 = vmatpush1.msra.mxu0 %v746
    %777 = vmatprep.subr.mxu0 0.0
    %778 = vmatpush1.msra.mxu0 %v747
    %779 = vmatprep.subr.mxu0 0.0
    %780 = vmatpush1.msra.mxu0 %v748
    %781 = vmatprep.subr.mxu0 0.0
    %782 = vmatpush1.msra.mxu0 %v749
    %783 = vmatprep.subr.mxu0 0.0
    %784 = vmatpush1.msra.mxu0 %v750
    %785 = vmatprep.subr.mxu0 0.0
    %786 = vmatpush1.msra.mxu0 %v751
    %787 = vmatprep.subr.mxu0 0.0
    %788 = vmatpush1.msra.mxu0 %v752
    %789 = vmatprep.subr.mxu0 0.0
    %790 = vmatpush1.msra.mxu0 %v753
    %791 = vmatprep.subr.mxu0 0.0
    %792 = vmatpush1.msra.mxu0 %v754
    %793 = vmatprep.subr.mxu0 0.0
    %794 = vmatpush1.msra.mxu0 0.0
    %795 = vmatprep.subr.mxu0 0.0
    %796 = vmatpush1.msra.mxu0 0.0
    %797 = vmatprep.subr.mxu0 0.0
    %798 = vmatpush1.msra.mxu0 0.0
    %799 = vmatprep.subr.mxu0 0.0
    %800 = vmatpush1.msra.mxu0 0.0
    %801 = vmatprep.subr.mxu0 0.0
    %802 = vmatpush1.msra.mxu0 0.0
    %803 = vmatprep.subr.mxu0 0.0
    %804 = vmatpush1.msra.mxu0 0.0
    %805 = vmatprep.subr.mxu0 0.0
    %806 = vmatpush1.msra.mxu0 0.0
    %807 = vmatprep.subr.mxu0 0.0
    %808 = vmatpush1.msra.mxu0 0.0
    %809 = vmatprep.subr.mxu0 0.0
    %810 = vmatpush1.msra.mxu0 0.0
    %811 = vmatprep.subr.mxu0 0.0
    %812 = vmatpush1.msra.mxu0 0.0
    %813 = vmatprep.subr.mxu0 0.0
    %814 = vmatpush1.msra.mxu0 0.0
    %815 = vmatprep.subr.mxu0 0.0
    %816 = vmatpush1.msra.mxu0 0.0
    %817 = vmatprep.subr.mxu0 0.0
    %818 = vmatpush1.msra.mxu0 0.0
    %819 = vmatprep.subr.mxu0 0.0
    %820 = vmatpush1.msra.mxu0 0.0
    %821 = vmatprep.subr.mxu0 0.0
    %822 = vmatpush1.msra.mxu0 0.0
    %823 = vmatprep.subr.mxu0 0.0
    %824 = vmatpush1.msra.mxu0 0.0
    %825 = vmatprep.mubr.f32.mxu0 0.0
    %826 = vmatmul.mubr.f32.gmra.mrb[0].mxu0 %v738
    %v827 = vpop.f32.mrb[0].mxu0
    %v828 = vadd.f32 %v759, %v827
    %v829 = vpop.f32.mrb[0].mxu0
    %830 = vdwg.mxu0
    %v831 = vxor.u32 %v694, 2147483648
    %v832 = vmul.f32 %v831, 1.442695
    %v833 = vpow.pop %v832
    %v834 = vadd.f32 %v833, 1.0
    %v835 = vrcp.pop %v834
    %v836 = vmul.f32 1.0, %v835
    %v837 = vsub.f32 1.0, %v836
    %v838 = vmul.f32 %v837, %v76
    %v839 = vmul.f32 %v836, %v828
    %v840 = vadd.f32 %v838, %v839
    %841 = vadd.xlane.f32.xlu0 %v840
    %v842 = vpop.xlane.xlu0 %841
    %v843 = vmul.f32 %v842, 0.03125
    %v844 = vsub.f32 %v840, %v843
    %v845 = vmul.f32 %v844, %v63
    %v846 = vmul.f32 %v845, %v845
    %847 = vadd.xlane.f32.xlu0 %v846
    %v848 = vpop.xlane.xlu0 %847
    %v849 = vmul.f32 %v848, 0.03125
    %v850 = vadd.f32 %v849, 1e-05
    %v851 = vrsqrt.pop %v850
    %v852 = vmul.f32 %v845, %v851
    %v854 = vlaneseq
    %v855 = vshrl.u32 %v854, 7
    %v856 = vsub.s32 0, %v855
    %v857 = vrot.slane %v55, %v856
    %v859 = vmul.f32 %v852, %v857
    %v861 = vlaneseq
    %v862 = vshrl.u32 %v861, 7
    %v863 = vsub.s32 0, %v862
    %v864 = vrot.slane %v56, %v863
    %v866 = vadd.f32 %v859, %v864
    %v867 = vxor.u32 %v693, 2147483648
    %v868 = vmul.f32 %v867, 1.442695
    %v869 = vpow.pop %v868
    %v870 = vadd.f32 %v869, 1.0
    %v871 = vrcp.pop %v870
    %v872 = vmul.f32 1.0, %v871
    %v873 = vadd.f32 %v738, %v866
    %v874 = vtanh.pop %v873
    %v875 = vmul.f32 %v872, %v874
    %876 = vadd.xlane.f32.xlu0 %v875
    %v877 = vpop.xlane.xlu0 %876
    %v878 = vmul.f32 %v877, 0.03125
    %v879 = vsub.f32 %v875, %v878
    %v880 = vmul.f32 %v879, %v63
    %v881 = vmul.f32 %v880, %v880
    %882 = vadd.xlane.f32.xlu0 %v881
    %v883 = vpop.xlane.xlu0 %882
    %v884 = vmul.f32 %v883, 0.03125
    %v885 = vadd.f32 %v884, 1e-05
    %v886 = vrsqrt.pop %v885
    %v887 = vmul.f32 %v880, %v886
    %v889 = vlaneseq
    %v890 = vshrl.u32 %v889, 7
    %v891 = vsub.s32 0, %v890
    %v892 = vrot.slane %v57, %v891
    %v894 = vmul.f32 %v887, %v892
    %v896 = vlaneseq
    %v897 = vshrl.u32 %v896, 7
    %v898 = vsub.s32 0, %v897
    %v899 = vrot.slane %v58, %v898
    %v901 = vadd.f32 %v894, %v899
    %902 = vst [vmem:[%s6] sm:$0xff] %v901
    %903 = vst [vmem:[%s6 + $0x8] sm:$0xff] %v866
    %904 = vst [vmem:[%s6 + $0x10] sm:$0xff] %v738
    // Predicated region
    $region34: #{_lambda_.1} parent=1 // pred_check
      _
    $region35: #{_lambda_.1} parent=1 // pred_check_branch
      %906 = sbr.rel (0) target = $region37
    $region36: #{_lambda_.1} parent=1 // pred_region
      _
    $region37: #{_lambda_.1} parent=1 // pred_fallthru
      _
    // Predicated region
    $region38: #{_lambda_.1} parent=1 // pred_check
      _
    $region39: #{_lambda_.1} parent=1 // pred_check_branch
      %908 = sbr.rel (0) target = $region41
    $region40: #{_lambda_.1} parent=1 // pred_region
      _
    $region41: #{_lambda_.1} parent=1 // pred_fallthru
      _
    %909 = vsyncpa [#allocation3], 1
    %910 = vsyncpa [#allocation5], 1

</llo_original>
